<compile_context>
chip_gen: v6e
topology: v6e:2x2x1
jax: 0.10.0
libtpu: 0.0.40
codegen_flags: <defaults>
</compile_context>

<pallas_src>
import functools

import jax
import jax.numpy as jnp
from jax.experimental import pallas as pl
from jax.experimental.pallas import tpu as pltpu


NEG_SLOPE = 0.01          # nn.LeakyReLU default negative_slope

IN_DIM = 784
H1, H2, NUM_CLASSES = 250, 100, 10
H1_PAD, H2_PAD, OUT_PAD = 256, 128, 128   # lane-aligned padded widths


def _leaky_relu(x):
    return jnp.where(x >= 0, x, NEG_SLOPE * x)


def _round_up(n, m):
    return ((n + m - 1) // m) * m


def mlp_kernel(x_ref, w1_ref, b1_ref, w2_ref, b2_ref, w3_ref, b3_ref, out_ref):
    # x_ref: (TILE_B, 784) f32; weights bf16 (padded); biases f32 (padded).
    # Cast x to bf16 in VMEM (VPU work hidden under the tile DMA) so the
    # wrapper never materializes a second full-batch copy of x in HBM.
    x = x_ref[...].astype(jnp.bfloat16)

    h1 = jnp.dot(x, w1_ref[...], preferred_element_type=jnp.float32) + b1_ref[...]
    h1 = _leaky_relu(h1)                                   # (TILE_B, 256) f32

    h2 = jnp.dot(h1.astype(jnp.bfloat16), w2_ref[...],
                 preferred_element_type=jnp.float32) + b2_ref[...]
    h2 = _leaky_relu(h2)                                   # (TILE_B, 128) f32

    logits = jnp.dot(h2.astype(jnp.bfloat16), w3_ref[...],
                     preferred_element_type=jnp.float32) + b3_ref[...]  # (TILE_B, 128)

    # Masked, numerically stable log-softmax over the 10 real classes only
    # (columns 10..127 are exact-zero padding and must not contribute).
    col = jax.lax.broadcasted_iota(jnp.int32, logits.shape, 1)
    valid = col < NUM_CLASSES
    masked = jnp.where(valid, logits, jnp.float32(-1e30))
    m = jnp.max(masked, axis=-1, keepdims=True)
    z = logits - m
    ez = jnp.where(valid, jnp.exp(z), jnp.float32(0.0))
    lse = jnp.log(jnp.sum(ez, axis=-1, keepdims=True))
    out_ref[...] = (z - lse)[:, :NUM_CLASSES]              # (TILE_B, 10) f32


def init_params(key):
    # Deterministic init mimicking PyTorch nn.Linear default:
    # U(-1/sqrt(fan_in), 1/sqrt(fan_in)) for both weights and biases.
    # Weights stored as (in_features, out_features) so the math is x @ W + b
    # (identical to PyTorch's x @ W_pt.T + b).
    dims = [(IN_DIM, H1), (H1, H2), (H2, NUM_CLASSES)]
    params = []
    for fan_in, fan_out in dims:
        key, kw, kb = jax.random.split(key, 3)
        bound = 1.0 / jnp.sqrt(float(fan_in))
        w = jax.random.uniform(kw, (fan_in, fan_out), jnp.float32, -bound, bound)
        b = jax.random.uniform(kb, (1, fan_out), jnp.float32, -bound, bound)
        params.extend([w, b])
    return tuple(params)


def _pad2(a, rows, cols):
    r, c = a.shape
    return jnp.pad(a, ((0, rows - r), (0, cols - c)))


def prepare_params(params):
    """Zero-pad to lane-aligned shapes; weights -> bf16, biases stay f32."""
    w1, b1, w2, b2, w3, b3 = params
    w1p = _pad2(w1, IN_DIM, H1_PAD).astype(jnp.bfloat16)
    b1p = _pad2(b1, 1, H1_PAD)
    w2p = _pad2(w2, H1_PAD, H2_PAD).astype(jnp.bfloat16)
    b2p = _pad2(b2, 1, H2_PAD)
    w3p = _pad2(w3, H2_PAD, OUT_PAD).astype(jnp.bfloat16)
    b3p = _pad2(b3, 1, OUT_PAD)
    return (w1p, b1p, w2p, b2p, w3p, b3p)


@functools.partial(jax.jit, static_argnames=("max_tile_b",))
def mlp_forward(x, prepped_params, max_tile_b=1024):
    w1, b1, w2, b2, w3, b3 = prepped_params
    B, D = x.shape
    assert D == IN_DIM

    # Batch tile: large enough to amortize per-grid-step overhead, capped so
    # the grid keeps >= ~4 steps (v7x megacore sharding over the "parallel"
    # batch axis) and double-buffered f32 x-tiles fit v5e's 16 MiB scoped VMEM.
    tile_b = max(16, min(_round_up(max_tile_b, 16),
                         _round_up(pl.cdiv(B, 4), 16)))
    B_pad = _round_up(B, tile_b)
    if B_pad != B:
        # Tail padding only when needed (copies at most one extra tile).
        x = jnp.pad(x, ((0, B_pad - B), (0, 0)))

    grid = (B_pad // tile_b,)

    weight_bytes = (IN_DIM * H1_PAD + H1_PAD * H2_PAD + H2_PAD * OUT_PAD) * 2 \
        + (H1_PAD + H2_PAD + OUT_PAD) * 4
    cost = pl.CostEstimate(
        flops=2 * B_pad * (IN_DIM * H1_PAD + H1_PAD * H2_PAD + H2_PAD * OUT_PAD),
        transcendentals=B_pad * NUM_CLASSES,
        bytes_accessed=B_pad * IN_DIM * 4 + weight_bytes + B_pad * NUM_CLASSES * 4,
    )

    out = pl.pallas_call(
        mlp_kernel,
        out_shape=jax.ShapeDtypeStruct((B_pad, NUM_CLASSES), jnp.float32),
        grid=grid,
        in_specs=[
            pl.BlockSpec((tile_b, IN_DIM), lambda i: (i, 0)),   # x: tiled over batch
            pl.BlockSpec((IN_DIM, H1_PAD), lambda i: (0, 0)),   # weights: VMEM-resident
            pl.BlockSpec((1, H1_PAD), lambda i: (0, 0)),
            pl.BlockSpec((H1_PAD, H2_PAD), lambda i: (0, 0)),
            pl.BlockSpec((1, H2_PAD), lambda i: (0, 0)),
            pl.BlockSpec((H2_PAD, OUT_PAD), lambda i: (0, 0)),
            pl.BlockSpec((1, OUT_PAD), lambda i: (0, 0)),
        ],
        # Narrow (tile_b, 10) output block: legal because the last block dim
        # equals the full array dim; removes the padded slab + wrapper slice.
        out_specs=pl.BlockSpec((tile_b, NUM_CLASSES), lambda i: (i, 0)),
        compiler_params=pltpu.CompilerParams(
            dimension_semantics=("parallel",)),  # megacore sharding on v7x
        cost_estimate=cost,
    )(x, w1, b1, w2, b2, w3, b3)

    return out if B_pad == B else out[:B]


def reference_forward(x, raw_params):
    # Pure-JAX f32 reference (matches the PyTorch module exactly).
    w1, b1, w2, b2, w3, b3 = raw_params
    h1 = _leaky_relu(x @ w1 + b1)
    h2 = _leaky_relu(h1 @ w2 + b2)
    logits = h2 @ w3 + b3
    return jax.nn.log_softmax(logits, axis=1)


def reference_forward_bf16(x, raw_params):
    # Matched-precision reference: bf16 matmul operands, f32 accumulation.
    w1, b1, w2, b2, w3, b3 = raw_params
    f32 = jnp.float32
    bf = jnp.bfloat16
    h1 = _leaky_relu(jnp.dot(x.astype(bf), w1.astype(bf),
                             preferred_element_type=f32) + b1)
    h2 = _leaky_relu(jnp.dot(h1.astype(bf), w2.astype(bf),
                             preferred_element_type=f32) + b2)
    logits = jnp.dot(h2.astype(bf), w3.astype(bf),
                     preferred_element_type=f32) + b3
    return jax.nn.log_softmax(logits, axis=1)


if __name__ == "__main__":
    key = jax.random.PRNGKey(0)
    key, kx = jax.random.split(key)

    B = 32
    x = jax.random.normal(kx, (B, IN_DIM), dtype=jnp.float32)
    raw_params = init_params(key)
    prepped = prepare_params(raw_params)

    # B=32 -> tile_b=16 -> grid of 2 batch tiles (exercises the pipelined path).
    out = mlp_forward(x, prepped)
    out = jax.block_until_ready(out)
    assert out.shape == (B, NUM_CLASSES)

    ref_bf16 = reference_forward_bf16(x, raw_params)
    ref_f32 = reference_forward(x, raw_params)
    assert jnp.allclose(out, ref_bf16, atol=5e-3, rtol=5e-3), \
        "mismatch vs matched-precision (bf16) reference"
    assert jnp.allclose(out, ref_f32, atol=1e-1, rtol=1e-1), \
        "mismatch vs f32 reference"

    print("KERNEL_OK")
</pallas_src>

<mosaic_0001>
module attributes {stable_mosaic.version = 11 : i64} {
  func.func @mlp_kernel(%arg0: i32, %arg1: memref<16x784xf32, #tpu.memory_space<vmem>>, %arg2: memref<784x256xbf16, #tpu.memory_space<vmem>>, %arg3: memref<1x256xf32, #tpu.memory_space<vmem>>, %arg4: memref<256x128xbf16, #tpu.memory_space<vmem>>, %arg5: memref<1x128xf32, #tpu.memory_space<vmem>>, %arg6: memref<128x128xbf16, #tpu.memory_space<vmem>>, %arg7: memref<1x128xf32, #tpu.memory_space<vmem>>, %arg8: memref<16x10xf32, #tpu.memory_space<vmem>>) attributes {dimension_semantics = [#tpu.dimension_semantics<parallel>], iteration_bounds = array<i64: 2>, scalar_prefetch = 0 : i64, scratch_operands = 0 : i64, tpu.core_type = #tpu.core_type<tc>, window_params = [{transform_indices = @transform_0, window_bounds = array<i64: 16, 784>}, {pipeline_mode = #tpu.pipeline_mode<synchronous>, transform_indices = @transform_1, window_bounds = array<i64: 784, 256>}, {pipeline_mode = #tpu.pipeline_mode<synchronous>, transform_indices = @transform_2, window_bounds = array<i64: 1, 256>}, {pipeline_mode = #tpu.pipeline_mode<synchronous>, transform_indices = @transform_3, window_bounds = array<i64: 256, 128>}, {pipeline_mode = #tpu.pipeline_mode<synchronous>, transform_indices = @transform_4, window_bounds = array<i64: 1, 128>}, {pipeline_mode = #tpu.pipeline_mode<synchronous>, transform_indices = @transform_5, window_bounds = array<i64: 128, 128>}, {pipeline_mode = #tpu.pipeline_mode<synchronous>, transform_indices = @transform_6, window_bounds = array<i64: 1, 128>}, {transform_indices = @transform_7, window_bounds = array<i64: 16, 10>}]} {
    %c0 = arith.constant 0 : index
    %c0_0 = arith.constant 0 : index
    %0 = vector.load %arg1[%c0, %c0_0] : memref<16x784xf32, #tpu.memory_space<vmem>>, vector<16x784xf32>
    %1 = arith.truncf %0 : vector<16x784xf32> to vector<16x784xbf16>
    %c0_1 = arith.constant 0 : index
    %c0_2 = arith.constant 0 : index
    %2 = vector.load %arg2[%c0_1, %c0_2] : memref<784x256xbf16, #tpu.memory_space<vmem>>, vector<784x256xbf16>
    %cst = arith.constant dense<0.000000e+00> : vector<16x256xf32>
    %3 = tpu.matmul %1, %2, %cst {dimension_numbers = #tpu.dot_dimension_numbers<[1], [0], [0], [1], [0, 0, 1, 1], [], []>} : vector<16x784xbf16>, vector<784x256xbf16>, vector<16x256xf32> -> vector<16x256xf32>
    %c0_3 = arith.constant 0 : index
    %c0_4 = arith.constant 0 : index
    %4 = vector.load %arg3[%c0_3, %c0_4] : memref<1x256xf32, #tpu.memory_space<vmem>>, vector<1x256xf32>
    %5 = vector.broadcast %4 : vector<1x256xf32> to vector<16x256xf32>
    %6 = arith.addf %3, %5 : vector<16x256xf32>
    %cst_5 = arith.constant 0.000000e+00 : f32
    %7 = vector.broadcast %cst_5 : f32 to vector<16x256xf32>
    %8 = arith.cmpf oge, %6, %7 : vector<16x256xf32>
    %cst_6 = arith.constant 0.00999999977 : f32
    %9 = vector.broadcast %cst_6 : f32 to vector<16x256xf32>
    %10 = arith.mulf %9, %6 : vector<16x256xf32>
    %11 = arith.select %8, %6, %10 : vector<16x256xi1>, vector<16x256xf32>
    %12 = arith.truncf %11 : vector<16x256xf32> to vector<16x256xbf16>
    %c0_7 = arith.constant 0 : index
    %c0_8 = arith.constant 0 : index
    %13 = vector.load %arg4[%c0_7, %c0_8] : memref<256x128xbf16, #tpu.memory_space<vmem>>, vector<256x128xbf16>
    %cst_9 = arith.constant dense<0.000000e+00> : vector<16x128xf32>
    %14 = tpu.matmul %12, %13, %cst_9 {dimension_numbers = #tpu.dot_dimension_numbers<[1], [0], [0], [1], [0, 0, 1, 1], [], []>} : vector<16x256xbf16>, vector<256x128xbf16>, vector<16x128xf32> -> vector<16x128xf32>
    %c0_10 = arith.constant 0 : index
    %c0_11 = arith.constant 0 : index
    %15 = vector.load %arg5[%c0_10, %c0_11] : memref<1x128xf32, #tpu.memory_space<vmem>>, vector<1x128xf32>
    %16 = vector.broadcast %15 : vector<1x128xf32> to vector<16x128xf32>
    %17 = arith.addf %14, %16 : vector<16x128xf32>
    %cst_12 = arith.constant 0.000000e+00 : f32
    %18 = vector.broadcast %cst_12 : f32 to vector<16x128xf32>
    %19 = arith.cmpf oge, %17, %18 : vector<16x128xf32>
    %cst_13 = arith.constant 0.00999999977 : f32
    %20 = vector.broadcast %cst_13 : f32 to vector<16x128xf32>
    %21 = arith.mulf %20, %17 : vector<16x128xf32>
    %22 = arith.select %19, %17, %21 : vector<16x128xi1>, vector<16x128xf32>
    %23 = arith.truncf %22 : vector<16x128xf32> to vector<16x128xbf16>
    %c0_14 = arith.constant 0 : index
    %c0_15 = arith.constant 0 : index
    %24 = vector.load %arg6[%c0_14, %c0_15] : memref<128x128xbf16, #tpu.memory_space<vmem>>, vector<128x128xbf16>
    %cst_16 = arith.constant dense<0.000000e+00> : vector<16x128xf32>
    %25 = tpu.matmul %23, %24, %cst_16 {dimension_numbers = #tpu.dot_dimension_numbers<[1], [0], [0], [1], [0, 0, 1, 1], [], []>} : vector<16x128xbf16>, vector<128x128xbf16>, vector<16x128xf32> -> vector<16x128xf32>
    %c0_17 = arith.constant 0 : index
    %c0_18 = arith.constant 0 : index
    %26 = vector.load %arg7[%c0_17, %c0_18] : memref<1x128xf32, #tpu.memory_space<vmem>>, vector<1x128xf32>
    %27 = vector.broadcast %26 : vector<1x128xf32> to vector<16x128xf32>
    %28 = arith.addf %25, %27 : vector<16x128xf32>
    %29 = tpu.iota {dimensions = array<i32: 1>} : vector<16x128xi32>
    %c10_i32 = arith.constant 10 : i32
    %30 = vector.broadcast %c10_i32 : i32 to vector<16x128xi32>
    %31 = arith.cmpi slt, %29, %30 : vector<16x128xi32>
    %cst_19 = arith.constant -1.000000e+30 : f32
    %32 = vector.broadcast %cst_19 : f32 to vector<16x128xf32>
    %33 = arith.select %31, %28, %32 : vector<16x128xi1>, vector<16x128xf32>
    %cst_20 = arith.constant dense<0xFF800000> : vector<16xf32>
    %34 = vector.multi_reduction <maximumf>, %33, %cst_20 [1] : vector<16x128xf32> to vector<16xf32>
    %35 = vector.shape_cast %34 : vector<16xf32> to vector<16x1xf32>
    %36 = vector.broadcast %35 : vector<16x1xf32> to vector<16x128xf32>
    %37 = arith.subf %28, %36 : vector<16x128xf32>
    %38 = math.exp %37 : vector<16x128xf32>
    %cst_21 = arith.constant 0.000000e+00 : f32
    %39 = vector.broadcast %cst_21 : f32 to vector<16x128xf32>
    %40 = arith.select %31, %38, %39 : vector<16x128xi1>, vector<16x128xf32>
    %cst_22 = arith.constant dense<0.000000e+00> : vector<16xf32>
    %41 = vector.multi_reduction <add>, %40, %cst_22 [1] : vector<16x128xf32> to vector<16xf32>
    %42 = vector.shape_cast %41 : vector<16xf32> to vector<16x1xf32>
    %43 = math.log %42 : vector<16x1xf32>
    %44 = vector.broadcast %43 : vector<16x1xf32> to vector<16x128xf32>
    %45 = arith.subf %37, %44 : vector<16x128xf32>
    %46 = vector.extract_strided_slice %45 {offsets = [0, 0], sizes = [16, 10], strides = [1, 1]} : vector<16x128xf32> to vector<16x10xf32>
    %c0_23 = arith.constant 0 : index
    %c0_24 = arith.constant 0 : index
    %47 = vector.load %arg8[%c0_23, %c0_24] : memref<16x10xf32, #tpu.memory_space<vmem>>, vector<16x10xf32>
    tpu.vector_store %arg8[%c0_23, %c0_24], %46 {strides = array<i32>} : memref<16x10xf32, #tpu.memory_space<vmem>>, vector<16x10xf32>,
    return
  }
  func.func @transform_0(%arg0: i32) -> (i32, i32) {
    %c0_i32 = arith.constant 0 : i32
    %c0_i32_0 = arith.constant 0 : i32
    return %arg0, %c0_i32 : i32, i32
  }
  func.func @transform_1(%arg0: i32) -> (i32, i32) {
    %c0_i32 = arith.constant 0 : i32
    %c0_i32_0 = arith.constant 0 : i32
    %c0_i32_1 = arith.constant 0 : i32
    return %c0_i32, %c0_i32_0 : i32, i32
  }
  func.func @transform_2(%arg0: i32) -> (i32, i32) {
    %c0_i32 = arith.constant 0 : i32
    %c0_i32_0 = arith.constant 0 : i32
    %c0_i32_1 = arith.constant 0 : i32
    return %c0_i32, %c0_i32_0 : i32, i32
  }
  func.func @transform_3(%arg0: i32) -> (i32, i32) {
    %c0_i32 = arith.constant 0 : i32
    %c0_i32_0 = arith.constant 0 : i32
    %c0_i32_1 = arith.constant 0 : i32
    return %c0_i32, %c0_i32_0 : i32, i32
  }
  func.func @transform_4(%arg0: i32) -> (i32, i32) {
    %c0_i32 = arith.constant 0 : i32
    %c0_i32_0 = arith.constant 0 : i32
    %c0_i32_1 = arith.constant 0 : i32
    return %c0_i32, %c0_i32_0 : i32, i32
  }
  func.func @transform_5(%arg0: i32) -> (i32, i32) {
    %c0_i32 = arith.constant 0 : i32
    %c0_i32_0 = arith.constant 0 : i32
    %c0_i32_1 = arith.constant 0 : i32
    return %c0_i32, %c0_i32_0 : i32, i32
  }
  func.func @transform_6(%arg0: i32) -> (i32, i32) {
    %c0_i32 = arith.constant 0 : i32
    %c0_i32_0 = arith.constant 0 : i32
    %c0_i32_1 = arith.constant 0 : i32
    return %c0_i32, %c0_i32_0 : i32, i32
  }
  func.func @transform_7(%arg0: i32) -> (i32, i32) {
    %c0_i32 = arith.constant 0 : i32
    %c0_i32_0 = arith.constant 0 : i32
    return %arg0, %c0_i32 : i32, i32
  }
}

</mosaic_0001>

<llo_original>
// kernel: mlp_forward.1
$region0: #{mlp_forward.1}
  #allocation0 [shape = 'u32[]', space=smem, size = 0x4, offset = 0x4, fixed_abs, tag = 'smem constant byte address 0x4 - core index']
  #allocation1 [shape = 'u32[144,128]{1,0:T(1,128)}', space=vmem, size = 0x12000, scoped, tag = 'internal scratch']
  %s0 = inlined_call_operand.hbm [shape: f32[32,784], index: 0, kind: input, shape index: {}]
  %s1 = inlined_call_operand.hbm [shape: bf16[784,256], index: 1, kind: input, shape index: {}]
  %s2 = inlined_call_operand.vmem [shape: f32[1,256], index: 2, kind: input, shape index: {}]
  %s3 = inlined_call_operand.hbm [shape: bf16[256,128], index: 3, kind: input, shape index: {}]
  %s4 = inlined_call_operand.vmem [shape: f32[1,128], index: 4, kind: input, shape index: {}]
  %s5 = inlined_call_operand.hbm [shape: bf16[128,128], index: 5, kind: input, shape index: {}]
  %s6 = inlined_call_operand.vmem [shape: f32[1,128], index: 6, kind: input, shape index: {}]
  %s7 = inlined_call_operand.vmem [shape: f32[32,10], index: 7, kind: output, shape index: {}]
  %s8 = sld [smem:[#allocation0]]
  $region77: #{mlp_forward.1} parent=0
    _
  %s10 = ssub.s32 1, %s8
  %s11 = scalar_select 0, %s10, %s8
  $region1: #{mlp_forward.1} parent=0
    #allocation2 [shape = 'u8[114688]{0}', space=vmem, size = 0x1c000, scoped, tag = 'input window, operand 0']
    #allocation3 [shape = 's32[2]{0}', space=sflag, size = 0x8, scoped, tag = 'scoped memory for mlp_forward.1']
    #allocation4 [shape = 'u8[401408]{0}', space=vmem, size = 0x62000, scoped, tag = 'input window, operand 1, single buffered']
    #allocation5 [shape = 's32[1]{0}', space=sflag, size = 0x4, scoped, tag = 'scoped memory for mlp_forward.1']
    #allocation6 [shape = 'u8[65536]{0}', space=vmem, size = 0x10000, scoped, tag = 'input window, operand 3, single buffered']
    #allocation7 [shape = 'u8[32768]{0}', space=vmem, size = 0x8000, scoped, tag = 'input window, operand 5, single buffered']
    #allocation8 [shape = 's32[1]{0}', space=sflag, size = 0x4, scoped, tag = 'scoped memory for mlp_forward.1']
    %12 = vsyncpa [#allocation3], 0
    %s13 = scalar_lea.sflag [#allocation3], 1
    %14 = vsyncpa %s13, 0
    %15 = vsyncpa [#allocation5], 0
    %16 = vsyncpa [#allocation8], 0
    loop: start=0, step=1, limit=4
    $region2: #{mlp_forward.1} parent=1 // loop_pre_header
      _
    $region3: #{mlp_forward.1} parent=1 // loop_header
      %s18 = sphi 0, %s22
      %p19 = scmp.ge.s32.totalorder %s18, 4
      %s28 = sphi 0, %s30
      %s31 = sphi 0, %s28
      %s32 = sphi 0, %s31
      %s48 = sphi 0, %s32
      %s52 = sphi 0, %s52
      %s54 = sphi 0, %s52
      %s55 = sphi 0, %s54
      %s69 = sphi 0, %s55
      %s73 = sphi 0, %s73
      %s75 = sphi 0, %s73
      %s76 = sphi 0, %s75
      %s90 = sphi 0, %s76
      %s94 = sphi 0, %s94
      %s96 = sphi 0, %s94
      %s97 = sphi 0, %s96
      %s111 = sphi 0, %s97
      %s115 = sphi 0, %s115
      %s117 = sphi 0, %s115
      %s118 = sphi 0, %s117
      %s132 = sphi 0, %s118
      %s136 = sphi 0, %s136
      %s138 = sphi 0, %s136
      %s139 = sphi 0, %s138
      %s153 = sphi 0, %s139
      %s157 = sphi 0, %s157
      %s159 = sphi 0, %s157
      %s160 = sphi 0, %s159
      %s174 = sphi 0, %s160
      %s180 = sphi 0, %s182
      %s183 = sphi 0, %s180
      %s184 = sphi 0, %s183
      %s200 = sphi 0, %s184
    $region4: #{mlp_forward.1} parent=1 // loop_header_branch
      %21 = sbr.rel (%p19) target = $region8
    $region5: #{mlp_forward.1} parent=1 // loop_body
      %s23 = ssub.s32 %s18, 1
      %s24 = ssub.s32 %s18, 2
      %s25 = sadd.s32 %s18, 1
      %s26 = ssub.s32 %s18, %s25
      %p27 = scmp.eq.s32.totalorder %s26, 0
      %s29 = sadd.s32 %s28, 1
      %s30 = scalar_select %p27, %s28, %s29
      %p33 = pneg %p27
      %p34 = scmp.eq.s32.totalorder %s18, 1
      %p35 = por %p33, %p34
      %p36 = scmp.ne.s32.totalorder %s28, %s31
      %p37 = scmp.eq.s32.totalorder %s18, 0
      %p38 = por %p36, %p37
      %p39 = scmp.ne.s32.totalorder %s28, %s31
      %p40 = scmp.eq.s32.totalorder %s23, 1
      %p41 = por %p39, %p40
      %p42 = scmp.ne.s32.totalorder %s31, %s32
      %p43 = scmp.eq.s32.totalorder %s23, 0
      %p44 = por %p42, %p43
      %p45 = scmp.ne.s32.totalorder %s31, %s32
      %p46 = scmp.eq.s32.totalorder %s24, 1
      %p47 = por %p45, %p46
      %p49 = scmp.ne.s32.totalorder %s32, %s48
      %p50 = scmp.eq.s32.totalorder %s24, 0
      %p51 = por %p49, %p50
      %s53 = sadd.s32 %s52, 1
      %p56 = scmp.eq.s32.totalorder %s18, 1
      %p57 = scmp.ne.s32.totalorder %s52, %s54
      %p58 = scmp.eq.s32.totalorder %s18, 0
      %p59 = por %p57, %p58
      %p60 = scmp.ne.s32.totalorder %s52, %s54
      %p61 = scmp.eq.s32.totalorder %s23, 1
      %p62 = por %p60, %p61
      %p63 = scmp.ne.s32.totalorder %s54, %s55
      %p64 = scmp.eq.s32.totalorder %s23, 0
      %p65 = por %p63, %p64
      %p66 = scmp.ne.s32.totalorder %s54, %s55
      %p67 = scmp.eq.s32.totalorder %s24, 1
      %p68 = por %p66, %p67
      %p70 = scmp.ne.s32.totalorder %s55, %s69
      %p71 = scmp.eq.s32.totalorder %s24, 0
      %p72 = por %p70, %p71
      %s74 = sadd.s32 %s73, 1
      %p77 = scmp.eq.s32.totalorder %s18, 1
      %p78 = scmp.ne.s32.totalorder %s73, %s75
      %p79 = scmp.eq.s32.totalorder %s18, 0
      %p80 = por %p78, %p79
      %p81 = scmp.ne.s32.totalorder %s73, %s75
      %p82 = scmp.eq.s32.totalorder %s23, 1
      %p83 = por %p81, %p82
      %p84 = scmp.ne.s32.totalorder %s75, %s76
      %p85 = scmp.eq.s32.totalorder %s23, 0
      %p86 = por %p84, %p85
      %p87 = scmp.ne.s32.totalorder %s75, %s76
      %p88 = scmp.eq.s32.totalorder %s24, 1
      %p89 = por %p87, %p88
      %p91 = scmp.ne.s32.totalorder %s76, %s90
      %p92 = scmp.eq.s32.totalorder %s24, 0
      %p93 = por %p91, %p92
      %s95 = sadd.s32 %s94, 1
      %p98 = scmp.eq.s32.totalorder %s18, 1
      %p99 = scmp.ne.s32.totalorder %s94, %s96
      %p100 = scmp.eq.s32.totalorder %s18, 0
      %p101 = por %p99, %p100
      %p102 = scmp.ne.s32.totalorder %s94, %s96
      %p103 = scmp.eq.s32.totalorder %s23, 1
      %p104 = por %p102, %p103
      %p105 = scmp.ne.s32.totalorder %s96, %s97
      %p106 = scmp.eq.s32.totalorder %s23, 0
      %p107 = por %p105, %p106
      %p108 = scmp.ne.s32.totalorder %s96, %s97
      %p109 = scmp.eq.s32.totalorder %s24, 1
      %p110 = por %p108, %p109
      %p112 = scmp.ne.s32.totalorder %s97, %s111
      %p113 = scmp.eq.s32.totalorder %s24, 0
      %p114 = por %p112, %p113
      %s116 = sadd.s32 %s115, 1
      %p119 = scmp.eq.s32.totalorder %s18, 1
      %p120 = scmp.ne.s32.totalorder %s115, %s117
      %p121 = scmp.eq.s32.totalorder %s18, 0
      %p122 = por %p120, %p121
      %p123 = scmp.ne.s32.totalorder %s115, %s117
      %p124 = scmp.eq.s32.totalorder %s23, 1
      %p125 = por %p123, %p124
      %p126 = scmp.ne.s32.totalorder %s117, %s118
      %p127 = scmp.eq.s32.totalorder %s23, 0
      %p128 = por %p126, %p127
      %p129 = scmp.ne.s32.totalorder %s117, %s118
      %p130 = scmp.eq.s32.totalorder %s24, 1
      %p131 = por %p129, %p130
      %p133 = scmp.ne.s32.totalorder %s118, %s132
      %p134 = scmp.eq.s32.totalorder %s24, 0
      %p135 = por %p133, %p134
      %s137 = sadd.s32 %s136, 1
      %p140 = scmp.eq.s32.totalorder %s18, 1
      %p141 = scmp.ne.s32.totalorder %s136, %s138
      %p142 = scmp.eq.s32.totalorder %s18, 0
      %p143 = por %p141, %p142
      %p144 = scmp.ne.s32.totalorder %s136, %s138
      %p145 = scmp.eq.s32.totalorder %s23, 1
      %p146 = por %p144, %p145
      %p147 = scmp.ne.s32.totalorder %s138, %s139
      %p148 = scmp.eq.s32.totalorder %s23, 0
      %p149 = por %p147, %p148
      %p150 = scmp.ne.s32.totalorder %s138, %s139
      %p151 = scmp.eq.s32.totalorder %s24, 1
      %p152 = por %p150, %p151
      %p154 = scmp.ne.s32.totalorder %s139, %s153
      %p155 = scmp.eq.s32.totalorder %s24, 0
      %p156 = por %p154, %p155
      %s158 = sadd.s32 %s157, 1
      %p161 = scmp.eq.s32.totalorder %s18, 1
      %p162 = scmp.ne.s32.totalorder %s157, %s159
      %p163 = scmp.eq.s32.totalorder %s18, 0
      %p164 = por %p162, %p163
      %p165 = scmp.ne.s32.totalorder %s157, %s159
      %p166 = scmp.eq.s32.totalorder %s23, 1
      %p167 = por %p165, %p166
      %p168 = scmp.ne.s32.totalorder %s159, %s160
      %p169 = scmp.eq.s32.totalorder %s23, 0
      %p170 = por %p168, %p169
      %p171 = scmp.ne.s32.totalorder %s159, %s160
      %p172 = scmp.eq.s32.totalorder %s24, 1
      %p173 = por %p171, %p172
      %p175 = scmp.ne.s32.totalorder %s160, %s174
      %p176 = scmp.eq.s32.totalorder %s24, 0
      %p177 = por %p175, %p176
      %s178 = ssub.s32 %s18, %s25
      %p179 = scmp.eq.s32.totalorder %s178, 0
      %s181 = sadd.s32 %s180, 1
      %s182 = scalar_select %p179, %s180, %s181
      %p185 = pneg %p179
      %p186 = scmp.eq.s32.totalorder %s18, 1
      %p187 = por %p185, %p186
      %p188 = scmp.ne.s32.totalorder %s180, %s183
      %p189 = scmp.eq.s32.totalorder %s18, 0
      %p190 = por %p188, %p189
      %p191 = scmp.ne.s32.totalorder %s180, %s183
      %p192 = scmp.eq.s32.totalorder %s23, 1
      %p193 = por %p191, %p192
      %p194 = scmp.ne.s32.totalorder %s183, %s184
      %p195 = scmp.eq.s32.totalorder %s23, 0
      %p196 = por %p194, %p195
      %p197 = scmp.ne.s32.totalorder %s183, %s184
      %p198 = scmp.eq.s32.totalorder %s24, 1
      %p199 = por %p197, %p198
      %p201 = scmp.ne.s32.totalorder %s184, %s200
      %p202 = scmp.eq.s32.totalorder %s24, 0
      %p203 = por %p201, %p202
      %p204 = scmp.le.s32.totalorder 1, %s18
      %p205 = scmp.lt.s32.totalorder %s18, 3
      %p206 = pnand %p204, %p205
      %p207 = pneg %p206
      // Predicated region
      $region9: #{mlp_forward.1} parent=5 // pred_check
        _
      $region10: #{mlp_forward.1} parent=5 // pred_check_branch
        %209 = sbr.rel (%p206) target = $region12
      $region11: #{mlp_forward.1} parent=5 // pred_region
        %s210 = ssub.s32 %s18, 1
        // Predicated region
        $region13: #{mlp_forward.1} parent=11 // pred_check
          %p211 = pneg %p65
        $region14: #{mlp_forward.1} parent=11 // pred_check_branch
          %213 = sbr.rel (%p211) target = $region16
        $region15: #{mlp_forward.1} parent=11 // pred_region
          %s215 = ssub.s32 12544, 12544
          %216 = vsyncadd [#allocation5], %s215
          %s217 = sshll.u32 [#allocation4], 4
          %s218 = int_to_ptr.vmem [resolvable:$true] %s217
          %223 = dma.hbm_to_vmem [thread:$0]  %s1, 12544, %s218, [#allocation5], 128, 128, 8
        $region16: #{mlp_forward.1} parent=11 // pred_fallthru
          _
        // Predicated region
        $region17: #{mlp_forward.1} parent=11 // pred_check
          %p224 = pneg %p86
        $region18: #{mlp_forward.1} parent=11 // pred_check_branch
          %226 = sbr.rel (%p224) target = $region20
        $region19: #{mlp_forward.1} parent=11 // pred_region
          _
        $region20: #{mlp_forward.1} parent=11 // pred_fallthru
          _
        // Predicated region
        $region21: #{mlp_forward.1} parent=11 // pred_check
          %p227 = pneg %p107
        $region22: #{mlp_forward.1} parent=11 // pred_check_branch
          %229 = sbr.rel (%p227) target = $region24
        $region23: #{mlp_forward.1} parent=11 // pred_region
          %s231 = ssub.s32 2048, 2048
          %232 = vsyncadd [#allocation5], %s231
          %s233 = sshll.u32 [#allocation6], 4
          %s234 = int_to_ptr.vmem [resolvable:$true] %s233
          %239 = dma.hbm_to_vmem [thread:$0]  %s3, 2048, %s234, [#allocation5], 64, 64, 4
        $region24: #{mlp_forward.1} parent=11 // pred_fallthru
          _
        // Predicated region
        $region25: #{mlp_forward.1} parent=11 // pred_check
          %p240 = pneg %p128
        $region26: #{mlp_forward.1} parent=11 // pred_check_branch
          %242 = sbr.rel (%p240) target = $region28
        $region27: #{mlp_forward.1} parent=11 // pred_region
          _
        $region28: #{mlp_forward.1} parent=11 // pred_fallthru
          _
        // Predicated region
        $region29: #{mlp_forward.1} parent=11 // pred_check
          %p243 = pneg %p149
        $region30: #{mlp_forward.1} parent=11 // pred_check_branch
          %245 = sbr.rel (%p243) target = $region32
        $region31: #{mlp_forward.1} parent=11 // pred_region
          %s247 = ssub.s32 1024, 1024
          %248 = vsyncadd [#allocation8], %s247
          %s249 = sshll.u32 [#allocation7], 4
          %s250 = int_to_ptr.vmem [resolvable:$true] %s249
          %255 = dma.hbm_to_vmem [thread:$0]  %s5, 1024, %s250, [#allocation8], 64, 64, 4
        $region32: #{mlp_forward.1} parent=11 // pred_fallthru
          _
        // Predicated region
        $region33: #{mlp_forward.1} parent=11 // pred_check
          %p256 = pneg %p170
        $region34: #{mlp_forward.1} parent=11 // pred_check_branch
          %258 = sbr.rel (%p256) target = $region36
        $region35: #{mlp_forward.1} parent=11 // pred_region
          _
        $region36: #{mlp_forward.1} parent=11 // pred_fallthru
          _
      $region12: #{mlp_forward.1} parent=5 // pred_fallthru
        _
      %p259 = scmp.lt.s32.totalorder %s18, 2
      // Predicated region
      $region37: #{mlp_forward.1} parent=5 // pred_check
        %p260 = pneg %p259
      $region38: #{mlp_forward.1} parent=5 // pred_check_branch
        %262 = sbr.rel (%p260) target = $region40
      $region39: #{mlp_forward.1} parent=5 // pred_region
        // Predicated region
        $region41: #{mlp_forward.1} parent=39 // pred_check
          %p263 = pneg %p38
        $region42: #{mlp_forward.1} parent=39 // pred_check_branch
          %265 = sbr.rel (%p263) target = $region44
        $region43: #{mlp_forward.1} parent=39 // pred_region
          %s266 = sand.u32 %s28, 1
          %s267 = scalar_lea.sflag [#allocation3], %s266
          %s268 = sand.u32 %s28, 1
          %s269 = smul.addr %s268, 112
          %s270 = scalar_lea.vmem [#allocation2], %s269
          %s271 = smul.u32 2, %s18
          %s273 = ssub.s32 1792, 1792
          %274 = vsyncadd %s267, %s273
          %s275 = smul.addr %s271, 7
          %s276 = smul.addr %s275, 128
          %s277 = scalar_lea.hbm %s0, %s276
          %s278 = sshll.u32 %s270, 4
          %s279 = int_to_ptr.vmem [resolvable:$true] %s278
          %284 = dma.hbm_to_vmem [thread:$0]  %s277, 1792, %s279, %s267, 896, 896, 56
        $region44: #{mlp_forward.1} parent=39 // pred_fallthru
          _
      $region40: #{mlp_forward.1} parent=5 // pred_fallthru
        _
      %p285 = scmp.le.s32.totalorder 1, %s18
      %p286 = scmp.lt.s32.totalorder %s18, 3
      %p287 = pnand %p285, %p286
      %p288 = pneg %p287
      // Predicated region
      $region45: #{mlp_forward.1} parent=5 // pred_check
        _
      $region46: #{mlp_forward.1} parent=5 // pred_check_branch
        %290 = sbr.rel (%p287) target = $region48
      $region47: #{mlp_forward.1} parent=5 // pred_region
        %s291 = ssub.s32 %s18, 1
        %s292 = sand.u32 %s31, 1
        %s293 = scalar_lea.sflag [#allocation3], %s292
        %s294 = sand.u32 %s31, 1
        %s295 = smul.addr %s294, 112
        %s296 = scalar_lea.vmem [#allocation2], %s295
        // Predicated region
        $region49: #{mlp_forward.1} parent=47 // pred_check
          %p297 = pneg %p44
        $region50: #{mlp_forward.1} parent=47 // pred_check_branch
          %299 = sbr.rel (%p297) target = $region52
        $region51: #{mlp_forward.1} parent=47 // pred_region
          %300 = dma.done %s293, 1792
        $region52: #{mlp_forward.1} parent=47 // pred_fallthru
          _
        // Predicated region
        $region53: #{mlp_forward.1} parent=47 // pred_check
          %p301 = pneg %p65
        $region54: #{mlp_forward.1} parent=47 // pred_check_branch
          %303 = sbr.rel (%p301) target = $region56
        $region55: #{mlp_forward.1} parent=47 // pred_region
          %304 = dma.done [#allocation5], 12544
        $region56: #{mlp_forward.1} parent=47 // pred_fallthru
          _
        // Predicated region
        $region57: #{mlp_forward.1} parent=47 // pred_check
          %p305 = pneg %p107
        $region58: #{mlp_forward.1} parent=47 // pred_check_branch
          %307 = sbr.rel (%p305) target = $region60
        $region59: #{mlp_forward.1} parent=47 // pred_region
          %308 = dma.done [#allocation5], 2048
        $region60: #{mlp_forward.1} parent=47 // pred_fallthru
          _
        // Predicated region
        $region61: #{mlp_forward.1} parent=47 // pred_check
          %p309 = pneg %p149
        $region62: #{mlp_forward.1} parent=47 // pred_check_branch
          %311 = sbr.rel (%p309) target = $region64
        $region63: #{mlp_forward.1} parent=47 // pred_region
          %312 = dma.done [#allocation8], 1024
        $region64: #{mlp_forward.1} parent=47 // pred_fallthru
          _
        %s313 = sand.u32 %s31, 1
        %s314 = scalar_lea.sflag [#allocation3], %s313
        %s315 = sand.u32 %s31, 1
        %s316 = smul.addr %s315, 112
        %s317 = scalar_lea.vmem [#allocation2], %s316
        %p318 = pneg %p44
        %p319 = pneg %p41
        %p320 = pneg %p65
        %p321 = pneg %p62
        %p322 = pneg %p86
        %p323 = pneg %p83
        %p324 = pneg %p107
        %p325 = pneg %p104
        %p326 = pneg %p128
        %p327 = pneg %p125
        %p328 = pneg %p149
        %p329 = pneg %p146
        %p330 = pneg %p170
        %p331 = pneg %p167
        %p332 = pneg %p196
        %p333 = pneg %p193
        %s334 = smul.u32 2, %s23
        %p335 = scmp.lt.s32.totalorder %s334, 3
        %s336 = scalar_select %p335, %s334, 3
        %s337 = smul.addr %s336, 8
        %s338 = scalar_lea.vmem %s7, %s337
        %s339 = smul.u32 2, %s23
        %s340 = smul.u32 2, %s23
        %p341 = scmp.lt.s32.totalorder %s340, 3
        %s342 = scalar_select %p341, %s340, 3
        %s343 = smul.addr %s342, 8
        %s344 = scalar_lea.vmem %s7, %s343
        %s345 = smul.u32 2, %s23
        %v347 = vld [vmem:[%s296] sm:$0xff]
        %v348 = vld [vmem:[%s296 + $0x8] sm:$0xff]
        %v349 = vld [vmem:[%s296 + $0x10] sm:$0xff]
        %v350 = vld [vmem:[%s296 + $0x18] sm:$0xff]
        %v351 = vld [vmem:[%s296 + $0x20] sm:$0xff]
        %v352 = vld [vmem:[%s296 + $0x28] sm:$0xff]
        %v353 = vld [vmem:[%s296 + $0x30] sm:$0xff]
        %v354 = vld [vmem:[%s296 + $0x38] sm:$0xff]
        %v355 = vld [vmem:[%s296 + $0x40] sm:$0xff]
        %v356 = vld [vmem:[%s296 + $0x48] sm:$0xff]
        %v357 = vld [vmem:[%s296 + $0x50] sm:$0xff]
        %v358 = vld [vmem:[%s296 + $0x58] sm:$0xff]
        %v359 = vld [vmem:[%s296 + $0x60] sm:$0xff]
        %v360 = vld [vmem:[%s296 + $0x68] sm:$0xff]
        %v361 = vpack.c.bf16 %v354, %v347
        %v362 = vpack.c.bf16 %v355, %v348
        %v363 = vpack.c.bf16 %v356, %v349
        %v364 = vpack.c.bf16 %v357, %v350
        %v365 = vpack.c.bf16 %v358, %v351
        %v366 = vpack.c.bf16 %v359, %v352
        %v367 = vpack.c.bf16 %v360, %v353
        %v368 = vld [vmem:[#allocation4] sm:$0xff]
        %v369 = vld [vmem:[#allocation4 + $0x8] sm:$0xff]
        %v370 = vld [vmem:[#allocation4 + $0x10] sm:$0xff]
        %v371 = vld [vmem:[#allocation4 + $0x18] sm:$0xff]
        %v372 = vld [vmem:[#allocation4 + $0x20] sm:$0xff]
        %v373 = vld [vmem:[#allocation4 + $0x28] sm:$0xff]
        %v374 = vld [vmem:[#allocation4 + $0x30] sm:$0xff]
        %v375 = vld [vmem:[#allocation4 + $0x38] sm:$0xff]
        %v376 = vld [vmem:[#allocation4 + $0x40] sm:$0xff]
        %v377 = vld [vmem:[#allocation4 + $0x48] sm:$0xff]
        %v378 = vld [vmem:[#allocation4 + $0x50] sm:$0xff]
        %v379 = vld [vmem:[#allocation4 + $0x58] sm:$0xff]
        %v380 = vld [vmem:[#allocation4 + $0x60] sm:$0xff]
        %v381 = vld [vmem:[#allocation4 + $0x68] sm:$0xff]
        %v382 = vld [vmem:[#allocation4 + $0x70] sm:$0xff]
        %v383 = vld [vmem:[#allocation4 + $0x78] sm:$0xff]
        %v384 = vld [vmem:[#allocation4 + $0x80] sm:$0xff]
        %v385 = vld [vmem:[#allocation4 + $0x88] sm:$0xff]
        %v386 = vld [vmem:[#allocation4 + $0x90] sm:$0xff]
        %v387 = vld [vmem:[#allocation4 + $0x98] sm:$0xff]
        %v388 = vld [vmem:[#allocation4 + $0xa0] sm:$0xff]
        %v389 = vld [vmem:[#allocation4 + $0xa8] sm:$0xff]
        %v390 = vld [vmem:[#allocation4 + $0xb0] sm:$0xff]
        %v391 = vld [vmem:[#allocation4 + $0xb8] sm:$0xff]
        %v392 = vld [vmem:[#allocation4 + $0xc0] sm:$0xff]
        %v393 = vld [vmem:[#allocation4 + $0xc8] sm:$0xff]
        %v394 = vld [vmem:[#allocation4 + $0xd0] sm:$0xff]
        %v395 = vld [vmem:[#allocation4 + $0xd8] sm:$0xff]
        %v396 = vld [vmem:[#allocation4 + $0xe0] sm:$0xff]
        %v397 = vld [vmem:[#allocation4 + $0xe8] sm:$0xff]
        %v398 = vld [vmem:[#allocation4 + $0xf0] sm:$0xff]
        %v399 = vld [vmem:[#allocation4 + $0xf8] sm:$0xff]
        %v400 = vld [vmem:[#allocation4 + $0x100] sm:$0xff]
        %v401 = vld [vmem:[#allocation4 + $0x108] sm:$0xff]
        %v402 = vld [vmem:[#allocation4 + $0x110] sm:$0xff]
        %v403 = vld [vmem:[#allocation4 + $0x118] sm:$0xff]
        %v404 = vld [vmem:[#allocation4 + $0x120] sm:$0xff]
        %v405 = vld [vmem:[#allocation4 + $0x128] sm:$0xff]
        %v406 = vld [vmem:[#allocation4 + $0x130] sm:$0xff]
        %v407 = vld [vmem:[#allocation4 + $0x138] sm:$0xff]
        %v408 = vld [vmem:[#allocation4 + $0x140] sm:$0xff]
        %v409 = vld [vmem:[#allocation4 + $0x148] sm:$0xff]
        %v410 = vld [vmem:[#allocation4 + $0x150] sm:$0xff]
        %v411 = vld [vmem:[#allocation4 + $0x158] sm:$0xff]
        %v412 = vld [vmem:[#allocation4 + $0x160] sm:$0xff]
        %v413 = vld [vmem:[#allocation4 + $0x168] sm:$0xff]
        %v414 = vld [vmem:[#allocation4 + $0x170] sm:$0xff]
        %v415 = vld [vmem:[#allocation4 + $0x178] sm:$0xff]
        %v416 = vld [vmem:[#allocation4 + $0x180] sm:$0xff]
        %v417 = vld [vmem:[#allocation4 + $0x188] sm:$0xff]
        %v418 = vld [vmem:[#allocation4 + $0x190] sm:$0xff]
        %v419 = vld [vmem:[#allocation4 + $0x198] sm:$0xff]
        %v420 = vld [vmem:[#allocation4 + $0x1a0] sm:$0xff]
        %v421 = vld [vmem:[#allocation4 + $0x1a8] sm:$0xff]
        %v422 = vld [vmem:[#allocation4 + $0x1b0] sm:$0xff]
        %v423 = vld [vmem:[#allocation4 + $0x1b8] sm:$0xff]
        %v424 = vld [vmem:[#allocation4 + $0x1c0] sm:$0xff]
        %v425 = vld [vmem:[#allocation4 + $0x1c8] sm:$0xff]
        %v426 = vld [vmem:[#allocation4 + $0x1d0] sm:$0xff]
        %v427 = vld [vmem:[#allocation4 + $0x1d8] sm:$0xff]
        %v428 = vld [vmem:[#allocation4 + $0x1e0] sm:$0xff]
        %v429 = vld [vmem:[#allocation4 + $0x1e8] sm:$0xff]
        %v430 = vld [vmem:[#allocation4 + $0x1f0] sm:$0xff]
        %v431 = vld [vmem:[#allocation4 + $0x1f8] sm:$0xff]
        %v432 = vld [vmem:[#allocation4 + $0x200] sm:$0xff]
        %v433 = vld [vmem:[#allocation4 + $0x208] sm:$0xff]
        %v434 = vld [vmem:[#allocation4 + $0x210] sm:$0xff]
        %v435 = vld [vmem:[#allocation4 + $0x218] sm:$0xff]
        %v436 = vld [vmem:[#allocation4 + $0x220] sm:$0xff]
        %v437 = vld [vmem:[#allocation4 + $0x228] sm:$0xff]
        %v438 = vld [vmem:[#allocation4 + $0x230] sm:$0xff]
        %v439 = vld [vmem:[#allocation4 + $0x238] sm:$0xff]
        %v440 = vld [vmem:[#allocation4 + $0x240] sm:$0xff]
        %v441 = vld [vmem:[#allocation4 + $0x248] sm:$0xff]
        %v442 = vld [vmem:[#allocation4 + $0x250] sm:$0xff]
        %v443 = vld [vmem:[#allocation4 + $0x258] sm:$0xff]
        %v444 = vld [vmem:[#allocation4 + $0x260] sm:$0xff]
        %v445 = vld [vmem:[#allocation4 + $0x268] sm:$0xff]
        %v446 = vld [vmem:[#allocation4 + $0x270] sm:$0xff]
        %v447 = vld [vmem:[#allocation4 + $0x278] sm:$0xff]
        %v448 = vld [vmem:[#allocation4 + $0x280] sm:$0xff]
        %v449 = vld [vmem:[#allocation4 + $0x288] sm:$0xff]
        %v450 = vld [vmem:[#allocation4 + $0x290] sm:$0xff]
        %v451 = vld [vmem:[#allocation4 + $0x298] sm:$0xff]
        %v452 = vld [vmem:[#allocation4 + $0x2a0] sm:$0xff]
        %v453 = vld [vmem:[#allocation4 + $0x2a8] sm:$0xff]
        %v454 = vld [vmem:[#allocation4 + $0x2b0] sm:$0xff]
        %v455 = vld [vmem:[#allocation4 + $0x2b8] sm:$0xff]
        %v456 = vld [vmem:[#allocation4 + $0x2c0] sm:$0xff]
        %v457 = vld [vmem:[#allocation4 + $0x2c8] sm:$0xff]
        %v458 = vld [vmem:[#allocation4 + $0x2d0] sm:$0xff]
        %v459 = vld [vmem:[#allocation4 + $0x2d8] sm:$0xff]
        %v460 = vld [vmem:[#allocation4 + $0x2e0] sm:$0xff]
        %v461 = vld [vmem:[#allocation4 + $0x2e8] sm:$0xff]
        %v462 = vld [vmem:[#allocation4 + $0x2f0] sm:$0xff]
        %v463 = vld [vmem:[#allocation4 + $0x2f8] sm:$0xff]
        %v464 = vld [vmem:[#allocation4 + $0x300] sm:$0xff]
        %v465 = vld [vmem:[#allocation4 + $0x308] sm:$0xff]
        %v466 = vld [vmem:[%s2] sm:$0x3]
        %v468 = vlaneseq
        %v469 = vshrl.u32 %v468, 7
        %v470 = vsub.s32 0, %v469
        %v471 = vrot.slane %v466, %v470
        %v472 = vlaneseq
        %v473 = vshrl.u32 %v472, 7
        %v474 = vsub.s32 1, %v473
        %v475 = vrot.slane %v466, %v474
        %v576 = vunpack.c.l.b16 %v368
        %v577 = vunpack.c.h.b16 %v368
        %v578 = vunpack.c.l.b16 %v369
        %v579 = vunpack.c.h.b16 %v369
        %v580 = vunpack.c.l.b16 %v370
        %v581 = vunpack.c.h.b16 %v370
        %v582 = vunpack.c.l.b16 %v371
        %v583 = vunpack.c.h.b16 %v371
        %v584 = vunpack.c.l.b16 %v372
        %v585 = vunpack.c.h.b16 %v372
        %v586 = vunpack.c.l.b16 %v373
        %v587 = vunpack.c.h.b16 %v373
        %v588 = vunpack.c.l.b16 %v374
        %v589 = vunpack.c.h.b16 %v374
        %v590 = vunpack.c.l.b16 %v375
        %v591 = vunpack.c.h.b16 %v375
        %v592 = vunpack.c.l.b16 %v376
        %v593 = vunpack.c.h.b16 %v376
        %v594 = vunpack.c.l.b16 %v377
        %v595 = vunpack.c.h.b16 %v377
        %v596 = vunpack.c.l.b16 %v378
        %v597 = vunpack.c.h.b16 %v378
        %v598 = vunpack.c.l.b16 %v379
        %v599 = vunpack.c.h.b16 %v379
        %v600 = vunpack.c.l.b16 %v380
        %v601 = vunpack.c.h.b16 %v380
        %v602 = vunpack.c.l.b16 %v381
        %v603 = vunpack.c.h.b16 %v381
        %v604 = vunpack.c.l.b16 %v382
        %v605 = vunpack.c.h.b16 %v382
        %v606 = vunpack.c.l.b16 %v383
        %v607 = vunpack.c.h.b16 %v383
        %v608 = vunpack.c.l.b16 %v384
        %v609 = vunpack.c.h.b16 %v384
        %v610 = vunpack.c.l.b16 %v385
        %v611 = vunpack.c.h.b16 %v385
        %v612 = vunpack.c.l.b16 %v386
        %v613 = vunpack.c.h.b16 %v386
        %v614 = vunpack.c.l.b16 %v387
        %v615 = vunpack.c.h.b16 %v387
        %v616 = vunpack.c.l.b16 %v388
        %v617 = vunpack.c.h.b16 %v388
        %v618 = vunpack.c.l.b16 %v389
        %v619 = vunpack.c.h.b16 %v389
        %v620 = vunpack.c.l.b16 %v390
        %v621 = vunpack.c.h.b16 %v390
        %v622 = vunpack.c.l.b16 %v391
        %v623 = vunpack.c.h.b16 %v391
        %v624 = vunpack.c.l.b16 %v392
        %v625 = vunpack.c.h.b16 %v392
        %v626 = vunpack.c.l.b16 %v393
        %v627 = vunpack.c.h.b16 %v393
        %v628 = vunpack.c.l.b16 %v394
        %v629 = vunpack.c.h.b16 %v394
        %v630 = vunpack.c.l.b16 %v395
        %v631 = vunpack.c.h.b16 %v395
        %v632 = vunpack.c.l.b16 %v396
        %v633 = vunpack.c.h.b16 %v396
        %v634 = vunpack.c.l.b16 %v397
        %v635 = vunpack.c.h.b16 %v397
        %v636 = vunpack.c.l.b16 %v398
        %v637 = vunpack.c.h.b16 %v398
        %v638 = vunpack.c.l.b16 %v399
        %v639 = vunpack.c.h.b16 %v399
        %v640 = vunpack.c.l.b16 %v400
        %v641 = vunpack.c.h.b16 %v400
        %v642 = vunpack.c.l.b16 %v401
        %v643 = vunpack.c.h.b16 %v401
        %v644 = vunpack.c.l.b16 %v402
        %v645 = vunpack.c.h.b16 %v402
        %v646 = vunpack.c.l.b16 %v403
        %v647 = vunpack.c.h.b16 %v403
        %v648 = vunpack.c.l.b16 %v404
        %v649 = vunpack.c.h.b16 %v404
        %v650 = vunpack.c.l.b16 %v405
        %v651 = vunpack.c.h.b16 %v405
        %v652 = vunpack.c.l.b16 %v406
        %v653 = vunpack.c.h.b16 %v406
        %v654 = vunpack.c.l.b16 %v407
        %v655 = vunpack.c.h.b16 %v407
        %v656 = vunpack.c.l.b16 %v408
        %v657 = vunpack.c.h.b16 %v408
        %v658 = vunpack.c.l.b16 %v409
        %v659 = vunpack.c.h.b16 %v409
        %v660 = vunpack.c.l.b16 %v410
        %v661 = vunpack.c.h.b16 %v410
        %v662 = vunpack.c.l.b16 %v411
        %v663 = vunpack.c.h.b16 %v411
        %v664 = vunpack.c.l.b16 %v412
        %v665 = vunpack.c.h.b16 %v412
        %v666 = vunpack.c.l.b16 %v413
        %v667 = vunpack.c.h.b16 %v413
        %v668 = vunpack.c.l.b16 %v414
        %v669 = vunpack.c.h.b16 %v414
        %v670 = vunpack.c.l.b16 %v415
        %v671 = vunpack.c.h.b16 %v415
        %v672 = vunpack.c.l.b16 %v416
        %v673 = vunpack.c.h.b16 %v416
        %v674 = vunpack.c.l.b16 %v417
        %v675 = vunpack.c.h.b16 %v417
        %v676 = vunpack.c.l.b16 %v418
        %v677 = vunpack.c.h.b16 %v418
        %v678 = vunpack.c.l.b16 %v419
        %v679 = vunpack.c.h.b16 %v419
        %v680 = vunpack.c.l.b16 %v420
        %v681 = vunpack.c.h.b16 %v420
        %v682 = vunpack.c.l.b16 %v421
        %v683 = vunpack.c.h.b16 %v421
        %v684 = vunpack.c.l.b16 %v422
        %v685 = vunpack.c.h.b16 %v422
        %v686 = vunpack.c.l.b16 %v423
        %v687 = vunpack.c.h.b16 %v423
        %v688 = vunpack.c.l.b16 %v424
        %v689 = vunpack.c.h.b16 %v424
        %v690 = vunpack.c.l.b16 %v425
        %v691 = vunpack.c.h.b16 %v425
        %v692 = vunpack.c.l.b16 %v426
        %v693 = vunpack.c.h.b16 %v426
        %v694 = vunpack.c.l.b16 %v427
        %v695 = vunpack.c.h.b16 %v427
        %v696 = vunpack.c.l.b16 %v428
        %v697 = vunpack.c.h.b16 %v428
        %v698 = vunpack.c.l.b16 %v429
        %v699 = vunpack.c.h.b16 %v429
        %v700 = vunpack.c.l.b16 %v430
        %v701 = vunpack.c.h.b16 %v430
        %v702 = vunpack.c.l.b16 %v431
        %v703 = vunpack.c.h.b16 %v431
        %v704 = vunpack.c.l.b16 %v432
        %v705 = vunpack.c.h.b16 %v432
        %v706 = vunpack.c.l.b16 %v433
        %v707 = vunpack.c.h.b16 %v433
        %v708 = vunpack.c.l.b16 %v434
        %v709 = vunpack.c.h.b16 %v434
        %v710 = vunpack.c.l.b16 %v435
        %v711 = vunpack.c.h.b16 %v435
        %v712 = vunpack.c.l.b16 %v436
        %v713 = vunpack.c.h.b16 %v436
        %v714 = vunpack.c.l.b16 %v437
        %v715 = vunpack.c.h.b16 %v437
        %v716 = vunpack.c.l.b16 %v438
        %v717 = vunpack.c.h.b16 %v438
        %v718 = vunpack.c.l.b16 %v439
        %v719 = vunpack.c.h.b16 %v439
        %v720 = vunpack.c.l.b16 %v440
        %v721 = vunpack.c.h.b16 %v440
        %v722 = vunpack.c.l.b16 %v441
        %v723 = vunpack.c.h.b16 %v441
        %v724 = vunpack.c.l.b16 %v442
        %v725 = vunpack.c.h.b16 %v442
        %v726 = vunpack.c.l.b16 %v443
        %v727 = vunpack.c.h.b16 %v443
        %v728 = vunpack.c.l.b16 %v444
        %v729 = vunpack.c.h.b16 %v444
        %v730 = vunpack.c.l.b16 %v445
        %v731 = vunpack.c.h.b16 %v445
        %v732 = vunpack.c.l.b16 %v446
        %v733 = vunpack.c.h.b16 %v446
        %v734 = vunpack.c.l.b16 %v447
        %v735 = vunpack.c.h.b16 %v447
        %v736 = vunpack.c.l.b16 %v448
        %v737 = vunpack.c.h.b16 %v448
        %v738 = vunpack.c.l.b16 %v449
        %v739 = vunpack.c.h.b16 %v449
        %v740 = vunpack.c.l.b16 %v450
        %v741 = vunpack.c.h.b16 %v450
        %v742 = vunpack.c.l.b16 %v451
        %v743 = vunpack.c.h.b16 %v451
        %v744 = vunpack.c.l.b16 %v452
        %v745 = vunpack.c.h.b16 %v452
        %v746 = vunpack.c.l.b16 %v453
        %v747 = vunpack.c.h.b16 %v453
        %v748 = vunpack.c.l.b16 %v454
        %v749 = vunpack.c.h.b16 %v454
        %v750 = vunpack.c.l.b16 %v455
        %v751 = vunpack.c.h.b16 %v455
        %v752 = vunpack.c.l.b16 %v456
        %v753 = vunpack.c.h.b16 %v456
        %v754 = vunpack.c.l.b16 %v457
        %v755 = vunpack.c.h.b16 %v457
        %v756 = vunpack.c.l.b16 %v458
        %v757 = vunpack.c.h.b16 %v458
        %v758 = vunpack.c.l.b16 %v459
        %v759 = vunpack.c.h.b16 %v459
        %v760 = vunpack.c.l.b16 %v460
        %v761 = vunpack.c.h.b16 %v460
        %v762 = vunpack.c.l.b16 %v461
        %v763 = vunpack.c.h.b16 %v461
        %v764 = vunpack.c.l.b16 %v462
        %v765 = vunpack.c.h.b16 %v462
        %v766 = vunpack.c.l.b16 %v463
        %v767 = vunpack.c.h.b16 %v463
        %v768 = vunpack.c.l.b16 %v464
        %v769 = vunpack.c.h.b16 %v464
        %v770 = vunpack.c.l.b16 %v465
        %v771 = vunpack.c.h.b16 %v465
        %v772 = vpack.c.b16 %v578, %v576
        %v773 = vpack.c.b16 %v579, %v577
        %v774 = vpack.c.b16 %v582, %v580
        %v775 = vpack.c.b16 %v583, %v581
        %v776 = vpack.c.b16 %v586, %v584
        %v777 = vpack.c.b16 %v587, %v585
        %v778 = vpack.c.b16 %v590, %v588
        %v779 = vpack.c.b16 %v591, %v589
        %v780 = vpack.c.b16 %v594, %v592
        %v781 = vpack.c.b16 %v595, %v593
        %v782 = vpack.c.b16 %v598, %v596
        %v783 = vpack.c.b16 %v599, %v597
        %v784 = vpack.c.b16 %v602, %v600
        %v785 = vpack.c.b16 %v603, %v601
        %v786 = vpack.c.b16 %v606, %v604
        %v787 = vpack.c.b16 %v607, %v605
        %v788 = vpack.c.b16 %v610, %v608
        %v789 = vpack.c.b16 %v611, %v609
        %v790 = vpack.c.b16 %v614, %v612
        %v791 = vpack.c.b16 %v615, %v613
        %v792 = vpack.c.b16 %v618, %v616
        %v793 = vpack.c.b16 %v619, %v617
        %v794 = vpack.c.b16 %v622, %v620
        %v795 = vpack.c.b16 %v623, %v621
        %v796 = vpack.c.b16 %v626, %v624
        %v797 = vpack.c.b16 %v627, %v625
        %v798 = vpack.c.b16 %v630, %v628
        %v799 = vpack.c.b16 %v631, %v629
        %v800 = vpack.c.b16 %v634, %v632
        %v801 = vpack.c.b16 %v635, %v633
        %v802 = vpack.c.b16 %v638, %v636
        %v803 = vpack.c.b16 %v639, %v637
        %v804 = vpack.c.b16 %v642, %v640
        %v805 = vpack.c.b16 %v643, %v641
        %v806 = vpack.c.b16 %v646, %v644
        %v807 = vpack.c.b16 %v647, %v645
        %v808 = vpack.c.b16 %v650, %v648
        %v809 = vpack.c.b16 %v651, %v649
        %v810 = vpack.c.b16 %v654, %v652
        %v811 = vpack.c.b16 %v655, %v653
        %v812 = vpack.c.b16 %v658, %v656
        %v813 = vpack.c.b16 %v659, %v657
        %v814 = vpack.c.b16 %v662, %v660
        %v815 = vpack.c.b16 %v663, %v661
        %v816 = vpack.c.b16 %v666, %v664
        %v817 = vpack.c.b16 %v667, %v665
        %v818 = vpack.c.b16 %v670, %v668
        %v819 = vpack.c.b16 %v671, %v669
        %v820 = vpack.c.b16 %v674, %v672
        %v821 = vpack.c.b16 %v675, %v673
        %v822 = vpack.c.b16 %v678, %v676
        %v823 = vpack.c.b16 %v679, %v677
        %v824 = vpack.c.b16 %v682, %v680
        %v825 = vpack.c.b16 %v683, %v681
        %v826 = vpack.c.b16 %v686, %v684
        %v827 = vpack.c.b16 %v687, %v685
        %v828 = vpack.c.b16 %v690, %v688
        %v829 = vpack.c.b16 %v691, %v689
        %v830 = vpack.c.b16 %v694, %v692
        %v831 = vpack.c.b16 %v695, %v693
        %v832 = vpack.c.b16 %v698, %v696
        %v833 = vpack.c.b16 %v699, %v697
        %v834 = vpack.c.b16 %v702, %v700
        %v835 = vpack.c.b16 %v703, %v701
        %v836 = vpack.c.b16 %v706, %v704
        %v837 = vpack.c.b16 %v707, %v705
        %v838 = vpack.c.b16 %v710, %v708
        %v839 = vpack.c.b16 %v711, %v709
        %v840 = vpack.c.b16 %v714, %v712
        %v841 = vpack.c.b16 %v715, %v713
        %v842 = vpack.c.b16 %v718, %v716
        %v843 = vpack.c.b16 %v719, %v717
        %v844 = vpack.c.b16 %v722, %v720
        %v845 = vpack.c.b16 %v723, %v721
        %v846 = vpack.c.b16 %v726, %v724
        %v847 = vpack.c.b16 %v727, %v725
        %v848 = vpack.c.b16 %v730, %v728
        %v849 = vpack.c.b16 %v731, %v729
        %v850 = vpack.c.b16 %v734, %v732
        %v851 = vpack.c.b16 %v735, %v733
        %v852 = vpack.c.b16 %v738, %v736
        %v853 = vpack.c.b16 %v739, %v737
        %v854 = vpack.c.b16 %v742, %v740
        %v855 = vpack.c.b16 %v743, %v741
        %v856 = vpack.c.b16 %v746, %v744
        %v857 = vpack.c.b16 %v747, %v745
        %v858 = vpack.c.b16 %v750, %v748
        %v859 = vpack.c.b16 %v751, %v749
        %v860 = vpack.c.b16 %v754, %v752
        %v861 = vpack.c.b16 %v755, %v753
        %v862 = vpack.c.b16 %v758, %v756
        %v863 = vpack.c.b16 %v759, %v757
        %v864 = vpack.c.b16 %v762, %v760
        %v865 = vpack.c.b16 %v763, %v761
        %v866 = vpack.c.b16 %v766, %v764
        %v867 = vpack.c.b16 %v767, %v765
        %v868 = vpack.c.b16 %v770, %v768
        %v869 = vpack.c.b16 %v771, %v769
        %vm968 = vcmask 130048
        %v970 = vsel %vm968, %v367, 0
        %972 = vmatprep.subr.bf16.mxu0 %v787
        %973 = vmatpush1.bf16.msra.mxu0 %v786
        %974 = vmatprep.subr.bf16.mxu0 %v785
        %975 = vmatpush1.bf16.msra.mxu0 %v784
        %976 = vmatprep.subr.bf16.mxu0 %v783
        %977 = vmatpush1.bf16.msra.mxu0 %v782
        %978 = vmatprep.subr.bf16.mxu0 %v781
        %979 = vmatpush1.bf16.msra.mxu0 %v780
        %980 = vmatprep.subr.bf16.mxu0 %v779
        %981 = vmatpush1.bf16.msra.mxu0 %v778
        %982 = vmatprep.subr.bf16.mxu0 %v777
        %983 = vmatpush1.bf16.msra.mxu0 %v776
        %984 = vmatprep.subr.bf16.mxu0 %v775
        %985 = vmatpush1.bf16.msra.mxu0 %v774
        %986 = vmatprep.subr.bf16.mxu0 %v773
        %987 = vmatpush1.bf16.msra.mxu0 %v772
        %988 = vmatprep.subr.bf16.mxu0 %v803
        %989 = vmatpush2.bf16.msra.mxu0 %v802
        %990 = vmatprep.subr.bf16.mxu0 %v801
        %991 = vmatpush2.bf16.msra.mxu0 %v800
        %992 = vmatprep.subr.bf16.mxu0 %v799
        %993 = vmatpush2.bf16.msra.mxu0 %v798
        %994 = vmatprep.subr.bf16.mxu0 %v797
        %995 = vmatpush2.bf16.msra.mxu0 %v796
        %996 = vmatprep.subr.bf16.mxu0 %v795
        %997 = vmatpush2.bf16.msra.mxu0 %v794
        %998 = vmatprep.subr.bf16.mxu0 %v793
        %999 = vmatpush2.bf16.msra.mxu0 %v792
        %1000 = vmatprep.subr.bf16.mxu0 %v791
        %1001 = vmatpush2.bf16.msra.mxu0 %v790
        %1002 = vmatprep.subr.bf16.mxu0 %v789
        %1003 = vmatpush2.bf16.msra.mxu0 %v788
        %1004 = vmatprep.mubr.bf16.mxu0 %v362
        %1005 = vmatmul.mubr.bf16.gmra.mxu0 %v361
        %v1006 = vpop.f32.mrf.mxu0
        %v1007 = vadd.f32 %v471, %v1006
        %v1008 = vpop.f32.mrf.mxu0
        %v1009 = vadd.f32 %v475, %v1008
        %v1010 = vpop.f32.mrf.mxu0
        %v1011 = vadd.f32 %v471, %v1010
        %v1012 = vpop.f32.mrf.mxu0
        %v1013 = vadd.f32 %v475, %v1012
        %1014 = vdwg.mxu0
        %1015 = vmatprep.subr.bf16.mxu0 %v819
        %1016 = vmatpush1.bf16.msra.mxu0 %v818
        %1017 = vmatprep.subr.bf16.mxu0 %v817
        %1018 = vmatpush1.bf16.msra.mxu0 %v816
        %1019 = vmatprep.subr.bf16.mxu0 %v815
        %1020 = vmatpush1.bf16.msra.mxu0 %v814
        %1021 = vmatprep.subr.bf16.mxu0 %v813
        %1022 = vmatpush1.bf16.msra.mxu0 %v812
        %1023 = vmatprep.subr.bf16.mxu0 %v811
        %1024 = vmatpush1.bf16.msra.mxu0 %v810
        %1025 = vmatprep.subr.bf16.mxu0 %v809
        %1026 = vmatpush1.bf16.msra.mxu0 %v808
        %1027 = vmatprep.subr.bf16.mxu0 %v807
        %1028 = vmatpush1.bf16.msra.mxu0 %v806
        %1029 = vmatprep.subr.bf16.mxu0 %v805
        %1030 = vmatpush1.bf16.msra.mxu0 %v804
        %1031 = vmatprep.subr.bf16.mxu0 %v835
        %1032 = vmatpush2.bf16.msra.mxu0 %v834
        %1033 = vmatprep.subr.bf16.mxu0 %v833
        %1034 = vmatpush2.bf16.msra.mxu0 %v832
        %1035 = vmatprep.subr.bf16.mxu0 %v831
        %1036 = vmatpush2.bf16.msra.mxu0 %v830
        %1037 = vmatprep.subr.bf16.mxu0 %v829
        %1038 = vmatpush2.bf16.msra.mxu0 %v828
        %1039 = vmatprep.subr.bf16.mxu0 %v827
        %1040 = vmatpush2.bf16.msra.mxu0 %v826
        %1041 = vmatprep.subr.bf16.mxu0 %v825
        %1042 = vmatpush2.bf16.msra.mxu0 %v824
        %1043 = vmatprep.subr.bf16.mxu0 %v823
        %1044 = vmatpush2.bf16.msra.mxu0 %v822
        %1045 = vmatprep.subr.bf16.mxu0 %v821
        %1046 = vmatpush2.bf16.msra.mxu0 %v820
        %1047 = vmatprep.mubr.bf16.mxu0 %v364
        %1048 = vmatmul.mubr.bf16.gmra.mxu0 %v363
        %v1049 = vpop.f32.mrf.mxu0
        %v1050 = vadd.f32 %v1007, %v1049
        %v1051 = vpop.f32.mrf.mxu0
        %v1052 = vadd.f32 %v1009, %v1051
        %v1053 = vpop.f32.mrf.mxu0
        %v1054 = vadd.f32 %v1011, %v1053
        %v1055 = vpop.f32.mrf.mxu0
        %v1056 = vadd.f32 %v1013, %v1055
        %1057 = vdwg.mxu0
        %1058 = vmatprep.subr.bf16.mxu0 %v851
        %1059 = vmatpush1.bf16.msra.mxu0 %v850
        %1060 = vmatprep.subr.bf16.mxu0 %v849
        %1061 = vmatpush1.bf16.msra.mxu0 %v848
        %1062 = vmatprep.subr.bf16.mxu0 %v847
        %1063 = vmatpush1.bf16.msra.mxu0 %v846
        %1064 = vmatprep.subr.bf16.mxu0 %v845
        %1065 = vmatpush1.bf16.msra.mxu0 %v844
        %1066 = vmatprep.subr.bf16.mxu0 %v843
        %1067 = vmatpush1.bf16.msra.mxu0 %v842
        %1068 = vmatprep.subr.bf16.mxu0 %v841
        %1069 = vmatpush1.bf16.msra.mxu0 %v840
        %1070 = vmatprep.subr.bf16.mxu0 %v839
        %1071 = vmatpush1.bf16.msra.mxu0 %v838
        %1072 = vmatprep.subr.bf16.mxu0 %v837
        %1073 = vmatpush1.bf16.msra.mxu0 %v836
        %1074 = vmatprep.subr.bf16.mxu0 %v867
        %1075 = vmatpush2.bf16.msra.mxu0 %v866
        %1076 = vmatprep.subr.bf16.mxu0 %v865
        %1077 = vmatpush2.bf16.msra.mxu0 %v864
        %1078 = vmatprep.subr.bf16.mxu0 %v863
        %1079 = vmatpush2.bf16.msra.mxu0 %v862
        %1080 = vmatprep.subr.bf16.mxu0 %v861
        %1081 = vmatpush2.bf16.msra.mxu0 %v860
        %1082 = vmatprep.subr.bf16.mxu0 %v859
        %1083 = vmatpush2.bf16.msra.mxu0 %v858
        %1084 = vmatprep.subr.bf16.mxu0 %v857
        %1085 = vmatpush2.bf16.msra.mxu0 %v856
        %1086 = vmatprep.subr.bf16.mxu0 %v855
        %1087 = vmatpush2.bf16.msra.mxu0 %v854
        %1088 = vmatprep.subr.bf16.mxu0 %v853
        %1089 = vmatpush2.bf16.msra.mxu0 %v852
        %1090 = vmatprep.mubr.bf16.mxu0 %v366
        %1091 = vmatmul.mubr.bf16.gmra.mxu0 %v365
        %v1092 = vpop.f32.mrf.mxu0
        %v1093 = vadd.f32 %v1050, %v1092
        %v1094 = vpop.f32.mrf.mxu0
        %v1095 = vadd.f32 %v1052, %v1094
        %v1096 = vpop.f32.mrf.mxu0
        %v1097 = vadd.f32 %v1054, %v1096
        %v1098 = vpop.f32.mrf.mxu0
        %v1099 = vadd.f32 %v1056, %v1098
        %1100 = vdwg.mxu0
        %1101 = vmatprep.subr.bf16.mxu0 0
        %1102 = vmatpush1.bf16.msra.mxu0 0
        %1103 = vmatprep.subr.bf16.mxu0 0
        %1104 = vmatpush1.bf16.msra.mxu0 0
        %1105 = vmatprep.subr.bf16.mxu0 0
        %1106 = vmatpush1.bf16.msra.mxu0 0
        %1107 = vmatprep.subr.bf16.mxu0 0
        %1108 = vmatpush1.bf16.msra.mxu0 0
        %1109 = vmatprep.subr.bf16.mxu0 0
        %1110 = vmatpush1.bf16.msra.mxu0 0
        %1111 = vmatprep.subr.bf16.mxu0 0
        %1112 = vmatpush1.bf16.msra.mxu0 0
        %1113 = vmatprep.subr.bf16.mxu0 0
        %1114 = vmatpush1.bf16.msra.mxu0 0
        %1115 = vmatprep.subr.bf16.mxu0 %v869
        %1116 = vmatpush1.bf16.msra.mxu0 %v868
        %1117 = vmatprep.subr.bf16.mxu0 0
        %1118 = vmatpush2.bf16.msra.mxu0 0
        %1119 = vmatprep.subr.bf16.mxu0 0
        %1120 = vmatpush2.bf16.msra.mxu0 0
        %1121 = vmatprep.subr.bf16.mxu0 0
        %1122 = vmatpush2.bf16.msra.mxu0 0
        %1123 = vmatprep.subr.bf16.mxu0 0
        %1124 = vmatpush2.bf16.msra.mxu0 0
        %1125 = vmatprep.subr.bf16.mxu0 0
        %1126 = vmatpush2.bf16.msra.mxu0 0
        %1127 = vmatprep.subr.bf16.mxu0 0
        %1128 = vmatpush2.bf16.msra.mxu0 0
        %1129 = vmatprep.subr.bf16.mxu0 0
        %1130 = vmatpush2.bf16.msra.mxu0 0
        %1131 = vmatprep.subr.bf16.mxu0 0
        %1132 = vmatpush2.bf16.msra.mxu0 0
        %1133 = vmatprep.mubr.bf16.mxu0 0
        %1134 = vmatmul.mubr.bf16.gmra.mxu0 %v970
        %v1135 = vpop.f32.mrf.mxu0
        %v1136 = vadd.f32 %v1093, %v1135
        %v1137 = vpop.f32.mrf.mxu0
        %v1138 = vadd.f32 %v1095, %v1137
        %v1139 = vpop.f32.mrf.mxu0
        %v1140 = vadd.f32 %v1097, %v1139
        %v1141 = vpop.f32.mrf.mxu0
        %v1142 = vadd.f32 %v1099, %v1141
        %1143 = vdwg.mxu0
        %vm1144 = vcmp.ge.f32.partialorder %v1136, 0.0
        %vm1145 = vcmp.ge.f32.partialorder %v1138, 0.0
        %vm1146 = vcmp.ge.f32.partialorder %v1140, 0.0
        %vm1147 = vcmp.ge.f32.partialorder %v1142, 0.0
        %v1148 = vmul.f32 %v1136, 0.01
        %v1149 = vmul.f32 %v1138, 0.01
        %v1150 = vmul.f32 %v1140, 0.01
        %v1151 = vmul.f32 %v1142, 0.01
        %v1152 = vsel %vm1144, %v1136, %v1148
        %v1153 = vsel %vm1145, %v1138, %v1149
        %v1154 = vsel %vm1146, %v1140, %v1150
        %v1155 = vsel %vm1147, %v1142, %v1151
        %v1156 = vpack.c.bf16 %v1154, %v1152
        %v1157 = vpack.c.bf16 %v1155, %v1153
        %v1158 = vld [vmem:[#allocation6] sm:$0xf]
        %v1159 = vld [vmem:[#allocation6 + $0x4] sm:$0xf]
        %v1160 = vld [vmem:[#allocation6 + $0x8] sm:$0xf]
        %v1161 = vld [vmem:[#allocation6 + $0xc] sm:$0xf]
        %v1162 = vld [vmem:[#allocation6 + $0x10] sm:$0xf]
        %v1163 = vld [vmem:[#allocation6 + $0x14] sm:$0xf]
        %v1164 = vld [vmem:[#allocation6 + $0x18] sm:$0xf]
        %v1165 = vld [vmem:[#allocation6 + $0x1c] sm:$0xf]
        %v1166 = vld [vmem:[#allocation6 + $0x20] sm:$0xf]
        %v1167 = vld [vmem:[#allocation6 + $0x24] sm:$0xf]
        %v1168 = vld [vmem:[#allocation6 + $0x28] sm:$0xf]
        %v1169 = vld [vmem:[#allocation6 + $0x2c] sm:$0xf]
        %v1170 = vld [vmem:[#allocation6 + $0x30] sm:$0xf]
        %v1171 = vld [vmem:[#allocation6 + $0x34] sm:$0xf]
        %v1172 = vld [vmem:[#allocation6 + $0x38] sm:$0xf]
        %v1173 = vld [vmem:[#allocation6 + $0x3c] sm:$0xf]
        %v1174 = vld [vmem:[#allocation6 + $0x40] sm:$0xf]
        %v1175 = vld [vmem:[#allocation6 + $0x44] sm:$0xf]
        %v1176 = vld [vmem:[#allocation6 + $0x48] sm:$0xf]
        %v1177 = vld [vmem:[#allocation6 + $0x4c] sm:$0xf]
        %v1178 = vld [vmem:[#allocation6 + $0x50] sm:$0xf]
        %v1179 = vld [vmem:[#allocation6 + $0x54] sm:$0xf]
        %v1180 = vld [vmem:[#allocation6 + $0x58] sm:$0xf]
        %v1181 = vld [vmem:[#allocation6 + $0x5c] sm:$0xf]
        %v1182 = vld [vmem:[#allocation6 + $0x60] sm:$0xf]
        %v1183 = vld [vmem:[#allocation6 + $0x64] sm:$0xf]
        %v1184 = vld [vmem:[#allocation6 + $0x68] sm:$0xf]
        %v1185 = vld [vmem:[#allocation6 + $0x6c] sm:$0xf]
        %v1186 = vld [vmem:[#allocation6 + $0x70] sm:$0xf]
        %v1187 = vld [vmem:[#allocation6 + $0x74] sm:$0xf]
        %v1188 = vld [vmem:[#allocation6 + $0x78] sm:$0xf]
        %v1189 = vld [vmem:[#allocation6 + $0x7c] sm:$0xf]
        %v1190 = vld [vmem:[%s4] sm:$0x1]
        %v1192 = vlaneseq
        %v1193 = vshrl.u32 %v1192, 7
        %v1194 = vsub.s32 0, %v1193
        %v1195 = vrot.slane %v1190, %v1194
        %v1229 = vunpack.c.l.b16 %v1158
        %v1230 = vunpack.c.l.b16 %v1159
        %v1231 = vunpack.c.l.b16 %v1160
        %v1232 = vunpack.c.l.b16 %v1161
        %v1233 = vunpack.c.l.b16 %v1162
        %v1234 = vunpack.c.l.b16 %v1163
        %v1235 = vunpack.c.l.b16 %v1164
        %v1236 = vunpack.c.l.b16 %v1165
        %v1237 = vunpack.c.l.b16 %v1166
        %v1238 = vunpack.c.l.b16 %v1167
        %v1239 = vunpack.c.l.b16 %v1168
        %v1240 = vunpack.c.l.b16 %v1169
        %v1241 = vunpack.c.l.b16 %v1170
        %v1242 = vunpack.c.l.b16 %v1171
        %v1243 = vunpack.c.l.b16 %v1172
        %v1244 = vunpack.c.l.b16 %v1173
        %v1245 = vunpack.c.l.b16 %v1174
        %v1246 = vunpack.c.l.b16 %v1175
        %v1247 = vunpack.c.l.b16 %v1176
        %v1248 = vunpack.c.l.b16 %v1177
        %v1249 = vunpack.c.l.b16 %v1178
        %v1250 = vunpack.c.l.b16 %v1179
        %v1251 = vunpack.c.l.b16 %v1180
        %v1252 = vunpack.c.l.b16 %v1181
        %v1253 = vunpack.c.l.b16 %v1182
        %v1254 = vunpack.c.l.b16 %v1183
        %v1255 = vunpack.c.l.b16 %v1184
        %v1256 = vunpack.c.l.b16 %v1185
        %v1257 = vunpack.c.l.b16 %v1186
        %v1258 = vunpack.c.l.b16 %v1187
        %v1259 = vunpack.c.l.b16 %v1188
        %v1260 = vunpack.c.l.b16 %v1189
        %v1261 = vpack.c.b16 %v1230, %v1229
        %v1262 = vpack.c.b16 %v1232, %v1231
        %v1263 = vpack.c.b16 %v1234, %v1233
        %v1264 = vpack.c.b16 %v1236, %v1235
        %v1265 = vpack.c.b16 %v1238, %v1237
        %v1266 = vpack.c.b16 %v1240, %v1239
        %v1267 = vpack.c.b16 %v1242, %v1241
        %v1268 = vpack.c.b16 %v1244, %v1243
        %v1269 = vpack.c.b16 %v1246, %v1245
        %v1270 = vpack.c.b16 %v1248, %v1247
        %v1271 = vpack.c.b16 %v1250, %v1249
        %v1272 = vpack.c.b16 %v1252, %v1251
        %v1273 = vpack.c.b16 %v1254, %v1253
        %v1274 = vpack.c.b16 %v1256, %v1255
        %v1275 = vpack.c.b16 %v1258, %v1257
        %v1276 = vpack.c.b16 %v1260, %v1259
        %1293 = vmatprep.subr.bf16.mxu0 0
        %1294 = vmatpush1.bf16.msra.mxu0 %v1268
        %1295 = vmatprep.subr.bf16.mxu0 0
        %1296 = vmatpush1.bf16.msra.mxu0 %v1267
        %1297 = vmatprep.subr.bf16.mxu0 0
        %1298 = vmatpush1.bf16.msra.mxu0 %v1266
        %1299 = vmatprep.subr.bf16.mxu0 0
        %1300 = vmatpush1.bf16.msra.mxu0 %v1265
        %1301 = vmatprep.subr.bf16.mxu0 0
        %1302 = vmatpush1.bf16.msra.mxu0 %v1264
        %1303 = vmatprep.subr.bf16.mxu0 0
        %1304 = vmatpush1.bf16.msra.mxu0 %v1263
        %1305 = vmatprep.subr.bf16.mxu0 0
        %1306 = vmatpush1.bf16.msra.mxu0 %v1262
        %1307 = vmatprep.subr.bf16.mxu0 0
        %1308 = vmatpush1.bf16.msra.mxu0 %v1261
        %1309 = vmatprep.subr.bf16.mxu0 0
        %1310 = vmatpush2.bf16.msra.mxu0 %v1276
        %1311 = vmatprep.subr.bf16.mxu0 0
        %1312 = vmatpush2.bf16.msra.mxu0 %v1275
        %1313 = vmatprep.subr.bf16.mxu0 0
        %1314 = vmatpush2.bf16.msra.mxu0 %v1274
        %1315 = vmatprep.subr.bf16.mxu0 0
        %1316 = vmatpush2.bf16.msra.mxu0 %v1273
        %1317 = vmatprep.subr.bf16.mxu0 0
        %1318 = vmatpush2.bf16.msra.mxu0 %v1272
        %1319 = vmatprep.subr.bf16.mxu0 0
        %1320 = vmatpush2.bf16.msra.mxu0 %v1271
        %1321 = vmatprep.subr.bf16.mxu0 0
        %1322 = vmatpush2.bf16.msra.mxu0 %v1270
        %1323 = vmatprep.subr.bf16.mxu0 0
        %1324 = vmatpush2.bf16.msra.mxu0 %v1269
        %1325 = vmatprep.mubr.bf16.mxu0 %v1157
        %1326 = vmatmul.mubr.bf16.gmra.mxu0 %v1156
        %v1327 = vpop.f32.mrf.mxu0
        %v1328 = vadd.f32 %v1195, %v1327
        %v1329 = vpop.f32.mrf.mxu0
        %v1330 = vpop.f32.mrf.mxu0
        %v1331 = vadd.f32 %v1195, %v1330
        %v1332 = vpop.f32.mrf.mxu0
        %1333 = vdwg.mxu0
        %vm1334 = vcmp.ge.f32.partialorder %v1328, 0.0
        %vm1335 = vcmp.ge.f32.partialorder %v1331, 0.0
        %v1336 = vmul.f32 %v1328, 0.01
        %v1337 = vmul.f32 %v1331, 0.01
        %v1338 = vsel %vm1334, %v1328, %v1336
        %v1339 = vsel %vm1335, %v1331, %v1337
        %v1340 = vpack.c.bf16 %v1339, %v1338
        %v1341 = vld [vmem:[#allocation7] sm:$0xf]
        %v1342 = vld [vmem:[#allocation7 + $0x4] sm:$0xf]
        %v1343 = vld [vmem:[#allocation7 + $0x8] sm:$0xf]
        %v1344 = vld [vmem:[#allocation7 + $0xc] sm:$0xf]
        %v1345 = vld [vmem:[#allocation7 + $0x10] sm:$0xf]
        %v1346 = vld [vmem:[#allocation7 + $0x14] sm:$0xf]
        %v1347 = vld [vmem:[#allocation7 + $0x18] sm:$0xf]
        %v1348 = vld [vmem:[#allocation7 + $0x1c] sm:$0xf]
        %v1349 = vld [vmem:[#allocation7 + $0x20] sm:$0xf]
        %v1350 = vld [vmem:[#allocation7 + $0x24] sm:$0xf]
        %v1351 = vld [vmem:[#allocation7 + $0x28] sm:$0xf]
        %v1352 = vld [vmem:[#allocation7 + $0x2c] sm:$0xf]
        %v1353 = vld [vmem:[#allocation7 + $0x30] sm:$0xf]
        %v1354 = vld [vmem:[#allocation7 + $0x34] sm:$0xf]
        %v1355 = vld [vmem:[#allocation7 + $0x38] sm:$0xf]
        %v1356 = vld [vmem:[#allocation7 + $0x3c] sm:$0xf]
        %v1357 = vld [vmem:[%s6] sm:$0x1]
        %v1359 = vlaneseq
        %v1360 = vshrl.u32 %v1359, 7
        %v1361 = vsub.s32 0, %v1360
        %v1362 = vrot.slane %v1357, %v1361
        %v1380 = vunpack.c.l.b16 %v1341
        %v1381 = vunpack.c.l.b16 %v1342
        %v1382 = vunpack.c.l.b16 %v1343
        %v1383 = vunpack.c.l.b16 %v1344
        %v1384 = vunpack.c.l.b16 %v1345
        %v1385 = vunpack.c.l.b16 %v1346
        %v1386 = vunpack.c.l.b16 %v1347
        %v1387 = vunpack.c.l.b16 %v1348
        %v1388 = vunpack.c.l.b16 %v1349
        %v1389 = vunpack.c.l.b16 %v1350
        %v1390 = vunpack.c.l.b16 %v1351
        %v1391 = vunpack.c.l.b16 %v1352
        %v1392 = vunpack.c.l.b16 %v1353
        %v1393 = vunpack.c.l.b16 %v1354
        %v1394 = vunpack.c.l.b16 %v1355
        %v1395 = vunpack.c.l.b16 %v1356
        %v1396 = vpack.c.b16 %v1381, %v1380
        %v1397 = vpack.c.b16 %v1383, %v1382
        %v1398 = vpack.c.b16 %v1385, %v1384
        %v1399 = vpack.c.b16 %v1387, %v1386
        %v1400 = vpack.c.b16 %v1389, %v1388
        %v1401 = vpack.c.b16 %v1391, %v1390
        %v1402 = vpack.c.b16 %v1393, %v1392
        %v1403 = vpack.c.b16 %v1395, %v1394
        %1412 = vmatprep.subr.bf16.mxu0 0
        %1413 = vmatpush1.bf16.msra.mxu0 %v1403
        %1414 = vmatprep.subr.bf16.mxu0 0
        %1415 = vmatpush1.bf16.msra.mxu0 %v1402
        %1416 = vmatprep.subr.bf16.mxu0 0
        %1417 = vmatpush1.bf16.msra.mxu0 %v1401
        %1418 = vmatprep.subr.bf16.mxu0 0
        %1419 = vmatpush1.bf16.msra.mxu0 %v1400
        %1420 = vmatprep.subr.bf16.mxu0 0
        %1421 = vmatpush1.bf16.msra.mxu0 %v1399
        %1422 = vmatprep.subr.bf16.mxu0 0
        %1423 = vmatpush1.bf16.msra.mxu0 %v1398
        %1424 = vmatprep.subr.bf16.mxu0 0
        %1425 = vmatpush1.bf16.msra.mxu0 %v1397
        %1426 = vmatprep.subr.bf16.mxu0 0
        %1427 = vmatpush1.bf16.msra.mxu0 %v1396
        %1428 = vmatprep.subr.bf16.mxu0 0
        %1429 = vmatpush2.bf16.msra.mxu0 0
        %1430 = vmatprep.subr.bf16.mxu0 0
        %1431 = vmatpush2.bf16.msra.mxu0 0
        %1432 = vmatprep.subr.bf16.mxu0 0
        %1433 = vmatpush2.bf16.msra.mxu0 0
        %1434 = vmatprep.subr.bf16.mxu0 0
        %1435 = vmatpush2.bf16.msra.mxu0 0
        %1436 = vmatprep.subr.bf16.mxu0 0
        %1437 = vmatpush2.bf16.msra.mxu0 0
        %1438 = vmatprep.subr.bf16.mxu0 0
        %1439 = vmatpush2.bf16.msra.mxu0 0
        %1440 = vmatprep.subr.bf16.mxu0 0
        %1441 = vmatpush2.bf16.msra.mxu0 0
        %1442 = vmatprep.subr.bf16.mxu0 0
        %1443 = vmatpush2.bf16.msra.mxu0 0
        %1444 = vmatprep.mubr.bf16.mxu0 0
        %1445 = vmatmul.mubr.bf16.gmra.mxu0 %v1340
        %v1446 = vpop.f32.mrf.mxu0
        %v1447 = vadd.f32 %v1362, %v1446
        %v1448 = vpop.f32.mrf.mxu0
        %v1449 = vpop.f32.mrf.mxu0
        %v1450 = vadd.f32 %v1362, %v1449
        %v1451 = vpop.f32.mrf.mxu0
        %1452 = vdwg.mxu0
        %v1453 = vlaneseq
        %v1454 = vand.u32 %v1453, 127
        %vm1455 = vcmp.lt.s32.totalorder %v1454, 10
        %v1456 = vsel %vm1455, %v1447, -1e+30
        %v1457 = vsel %vm1455, %v1450, -1e+30
        %1458 = vmax.xlane.f32.xlu0 %v1456
        %v1459 = vpop.xlane.xlu0 %1458
        %1460 = vmax.xlane.f32.xlu0 %v1457
        %v1461 = vpop.xlane.xlu0 %1460
        %v1462 = vsub.f32 %v1447, %v1459
        %v1463 = vsub.f32 %v1450, %v1461
        %v1464 = vmul.f32 %v1462, 1.442695
        %v1465 = vpow.pop %v1464
        %v1466 = vmul.f32 %v1463, 1.442695
        %v1467 = vpow.pop %v1466
        %v1468 = vsel %vm1455, %v1465, 0.0
        %v1469 = vsel %vm1455, %v1467, 0.0
        %1470 = vadd.xlane.f32.xlu0 %v1468
        %v1471 = vpop.xlane.xlu0 %1470
        %1472 = vadd.xlane.f32.xlu0 %v1469
        %v1473 = vpop.xlane.xlu0 %1472
        %v1474 = vlog2.pop %v1471
        %v1475 = vmul.f32 %v1474, 0.6931472
        %v1476 = vlog2.pop %v1473
        %v1477 = vmul.f32 %v1476, 0.6931472
        %v1478 = vsub.f32 %v1462, %v1475
        %v1479 = vsub.f32 %v1463, %v1477
        %vm1480 = vcmask 80896
        %1481 = vst.msk [vmem:[%s344] sm:$0xff] %vm1480, %v1478
        %1482 = vst.msk [vmem:[%s344 + $0x8] sm:$0xff] %vm1480, %v1479
        %s1483 = smul.u32 2, %s23
        %p1484 = scmp.lt.s32.totalorder %s1483, 3
        %s1485 = scalar_select %p1484, %s1483, 3
        %s1486 = smul.addr %s1485, 8
        %s1487 = scalar_lea.vmem %s7, %s1486
        // Predicated region
        $region65: #{mlp_forward.1} parent=47 // pred_check
          %p1488 = pneg %p193
        $region66: #{mlp_forward.1} parent=47 // pred_check_branch
          %1490 = sbr.rel (%p1488) target = $region68
        $region67: #{mlp_forward.1} parent=47 // pred_region
          %s1491 = smul.u32 2, %s23
        $region68: #{mlp_forward.1} parent=47 // pred_fallthru
          _
      $region48: #{mlp_forward.1} parent=5 // pred_fallthru
        _
      %p1492 = scmp.le.s32.totalorder 2, %s18
      // Predicated region
      $region69: #{mlp_forward.1} parent=5 // pred_check
        %p1493 = pneg %p1492
      $region70: #{mlp_forward.1} parent=5 // pred_check_branch
        %1495 = sbr.rel (%p1493) target = $region72
      $region71: #{mlp_forward.1} parent=5 // pred_region
        %s1496 = ssub.s32 %s18, 2
        // Predicated region
        $region73: #{mlp_forward.1} parent=71 // pred_check
          %p1497 = pneg %p199
        $region74: #{mlp_forward.1} parent=71 // pred_check_branch
          %1499 = sbr.rel (%p1497) target = $region76
        $region75: #{mlp_forward.1} parent=71 // pred_region
          %s1500 = smul.u32 2, %s24
          %p1501 = scmp.lt.s32.totalorder %s1500, 3
          %s1502 = scalar_select %p1501, %s1500, 3
          %s1503 = smul.addr %s1502, 8
          %s1504 = scalar_lea.vmem %s7, %s1503
        $region76: #{mlp_forward.1} parent=71 // pred_fallthru
          _
      $region72: #{mlp_forward.1} parent=5 // pred_fallthru
        _
    $region6: #{mlp_forward.1} parent=1 // loop_footer
      %s22 = sadd.s32 1, %s18
    $region7: #{mlp_forward.1} parent=1 // loop_footer_branch
      %17 = sbr.rel target = $region3
    $region8: #{mlp_forward.1} parent=1 // loop_exit
      _
    %1505 = vsyncpa [#allocation3], 1
    %s1506 = scalar_lea.sflag [#allocation3], 1
    %1507 = vsyncpa %s1506, 1
    %1508 = vsyncpa [#allocation5], 1
    %1509 = vsyncpa [#allocation8], 1

</llo_original>
